<compile_context>
chip_gen: v7x
topology: tpu7x:2x2x1
jax: 0.10.0
libtpu: 0.0.40
codegen_flags: <defaults>
</compile_context>

<pallas_src>
import functools

import jax
import jax.numpy as jnp
from jax.experimental import pallas as pl
from jax.experimental.pallas import tpu as pltpu


IN_FEATURES = 1 * 64 * 32   # 2048
OUT_FEATURES = 100


def _round_up(n, m):
    return ((n + m - 1) // m) * m


def _pad2d(a, rows, cols):
    r, c = a.shape
    if r == rows and c == cols:
        return a
    return jnp.pad(a, ((0, rows - r), (0, cols - c)))


def _activate(y, activation):
    if activation == "relu":
        return jnp.maximum(y, 0.0)
    if activation == "sig":
        return jax.nn.sigmoid(y)
    if activation == "tanh":
        return jnp.tanh(y)
    raise ValueError(f"unknown activation: {activation}")


def _mlp_kernel(*refs, activation, n_layers):
    """Fused MLP: o = (xW1+b1) [act -> W2+b2 [act -> W3+b3]].

    refs = (x_ref, w1_ref, b1_ref, ..., wL_ref, bL_ref, o_ref); everything is
    a single VMEM-resident block (no grid).
    """
    x_ref = refs[0]
    o_ref = refs[-1]
    wb = refs[1:-1]

    h = x_ref[...]
    for i in range(n_layers):
        w = wb[2 * i][...]
        b = wb[2 * i + 1][...]
        h = jnp.dot(h, w, preferred_element_type=jnp.float32) + b.astype(jnp.float32)
        if i < n_layers - 1:          # activation between layers only
            h = _activate(h, activation)
    o_ref[...] = h.astype(o_ref.dtype)


def _fused_mlp(x_flat, layers, activation):
    """x_flat: (B, K) f32; layers: list of (w (K_i, N_i), b (1, N_i))."""
    B, K = x_flat.shape
    n_layers = len(layers)

    # Padded dims: rows -> multiple of 8 (sublanes), features -> multiple of 128 (lanes).
    Bp = max(_round_up(B, 8), 8)
    dims = [K] + [w.shape[1] for (w, _) in layers]
    dims_p = [_round_up(d, 128) for d in dims]

    xp = _pad2d(x_flat, Bp, dims_p[0])
    flat_params = []
    for i, (w, b) in enumerate(layers):
        flat_params.append(_pad2d(w.astype(jnp.float32), dims_p[i], dims_p[i + 1]))
        flat_params.append(_pad2d(b.astype(jnp.float32), 1, dims_p[i + 1]))

    N, Np = dims[-1], dims_p[-1]
    kernel = functools.partial(_mlp_kernel, activation=activation, n_layers=n_layers)

    out = pl.pallas_call(
        kernel,
        out_shape=jax.ShapeDtypeStruct((Bp, Np), jnp.float32),
        in_specs=[pl.BlockSpec(memory_space=pltpu.MemorySpace.VMEM)]
        * (1 + 2 * n_layers),
        out_specs=pl.BlockSpec(memory_space=pltpu.MemorySpace.VMEM),
    )(xp, *flat_params)

    return out[:B, :N]


def init_linear_params(key, in_features, out_features, dtype=jnp.float32):
    """nn.Linear-style init: U(-1/sqrt(in), 1/sqrt(in)); stored as (in, out) == W^T."""
    kw, kb = jax.random.split(key)
    bound = 1.0 / jnp.sqrt(jnp.float32(in_features))
    w = jax.random.uniform(kw, (in_features, out_features), dtype, -bound, bound)
    b = jax.random.uniform(kb, (1, out_features), dtype, -bound, bound)
    return w, b


def init_mymodel_params(key, layer, size):
    keys = jax.random.split(key, 3)
    if layer == 0:
        return {"fc": init_linear_params(keys[0], IN_FEATURES, OUT_FEATURES)}
    if layer == 1:
        return {
            "fc1": init_linear_params(keys[0], IN_FEATURES, size),
            "fc2": init_linear_params(keys[1], size, OUT_FEATURES),
        }
    if layer == 2:
        return {
            "fc1": init_linear_params(keys[0], IN_FEATURES, size),
            "fc2": init_linear_params(keys[1], size, size),
            "fc3": init_linear_params(keys[2], size, OUT_FEATURES),
        }
    raise ValueError(f"unsupported layer={layer}")


@functools.partial(jax.jit, static_argnames=("layer", "func"))
def mymodel_forward(params, x, layer, func):
    """Pallas implementation of MyModel.forward(x, layer, func)."""
    B = x.shape[0]
    x = x.reshape(B, -1).astype(jnp.float32)  # == x.view(x.size(0), -1)
    if layer == 0:
        layers = [params["fc"]]
    elif layer == 1:
        layers = [params["fc1"], params["fc2"]]
    elif layer == 2:
        layers = [params["fc1"], params["fc2"], params["fc3"]]
    else:
        raise ValueError(f"unsupported layer={layer}")
    return _fused_mlp(x, layers, func)


def _ref_forward(params, x, layer, func):
    """Pure-JAX reference for correctness checking."""
    acts = {"relu": jax.nn.relu, "sig": jax.nn.sigmoid, "tanh": jnp.tanh}
    f = acts[func]
    x = x.reshape(x.shape[0], -1)
    if layer == 0:
        w, b = params["fc"]
        return x @ w + b
    if layer == 1:
        (w1, b1), (w2, b2) = params["fc1"], params["fc2"]
        return f(x @ w1 + b1) @ w2 + b2
    (w1, b1), (w2, b2), (w3, b3) = params["fc1"], params["fc2"], params["fc3"]
    return f(f(x @ w1 + b1) @ w2 + b2) @ w3 + b3


if __name__ == "__main__":
    key = jax.random.PRNGKey(0)
    k_x, k_p = jax.random.split(key)

    batch = 2
    size = 128          # hidden width ("size" ctor arg)

    # Input matching the module's implied shape: (B, 1, 64, 32) in NCHW.
    x = jax.random.normal(k_x, (batch, 1, 64, 32), dtype=jnp.float32)

    # Primary config: 3-layer MLP with ReLU.
    params = init_mymodel_params(k_p, 2, size)
    out = jax.block_until_ready(mymodel_forward(params, x, 2, "relu"))
    assert out.shape == (batch, OUT_FEATURES), out.shape
    ref = _ref_forward(params, x, 2, "relu")
    assert jnp.allclose(out, ref, atol=1e-4, rtol=1e-4), (
        float(jnp.max(jnp.abs(out - ref)))
    )

    # A few extra configurations (kept small to limit compile count/time).
    checks = [
        (0, "tanh", size),   # single Linear, activation unused between layers
        (1, "sig", size),    # 2-layer MLP, sigmoid
        (2, "tanh", 100),    # ragged hidden size (not a multiple of 128)
    ]
    for lyr, fn, hid in checks:
        p = init_mymodel_params(k_p, lyr, hid)
        o = jax.block_until_ready(mymodel_forward(p, x, lyr, fn))
        r = _ref_forward(p, x, lyr, fn)
        assert o.shape == (batch, OUT_FEATURES)
        assert jnp.allclose(o, r, atol=1e-4, rtol=1e-4), (
            lyr, fn, hid, float(jnp.max(jnp.abs(o - r)))
        )

    print("KERNEL_OK")
</pallas_src>

<mosaic_0001>
module attributes {stable_mosaic.version = 11 : i64} {
  func.func @_mlp_kernel(%arg0: memref<8x2048xf32, #tpu.memory_space<vmem>>, %arg1: memref<2048x128xf32, #tpu.memory_space<vmem>>, %arg2: memref<1x128xf32, #tpu.memory_space<vmem>>, %arg3: memref<128x128xf32, #tpu.memory_space<vmem>>, %arg4: memref<1x128xf32, #tpu.memory_space<vmem>>, %arg5: memref<128x128xf32, #tpu.memory_space<vmem>>, %arg6: memref<1x128xf32, #tpu.memory_space<vmem>>, %arg7: memref<8x128xf32, #tpu.memory_space<vmem>>) attributes {dimension_semantics = [], scalar_prefetch = 0 : i64, scratch_operands = 0 : i64, tpu.core_type = #tpu.core_type<tc>} {
    %c0 = arith.constant 0 : index
    %c0_0 = arith.constant 0 : index
    %0 = vector.load %arg0[%c0, %c0_0] : memref<8x2048xf32, #tpu.memory_space<vmem>>, vector<8x2048xf32>
    %c0_1 = arith.constant 0 : index
    %c0_2 = arith.constant 0 : index
    %1 = vector.load %arg1[%c0_1, %c0_2] : memref<2048x128xf32, #tpu.memory_space<vmem>>, vector<2048x128xf32>
    %c0_3 = arith.constant 0 : index
    %c0_4 = arith.constant 0 : index
    %2 = vector.load %arg2[%c0_3, %c0_4] : memref<1x128xf32, #tpu.memory_space<vmem>>, vector<1x128xf32>
    %cst = arith.constant dense<0.000000e+00> : vector<8x128xf32>
    %3 = tpu.matmul %0, %1, %cst {dimension_numbers = #tpu.dot_dimension_numbers<[1], [0], [0], [1], [0, 0, 1, 1], [], []>} : vector<8x2048xf32>, vector<2048x128xf32>, vector<8x128xf32> -> vector<8x128xf32>
    %4 = vector.broadcast %2 : vector<1x128xf32> to vector<8x128xf32>
    %5 = arith.addf %3, %4 : vector<8x128xf32>
    %cst_5 = arith.constant 0.000000e+00 : f32
    %6 = vector.broadcast %cst_5 : f32 to vector<8x128xf32>
    %7 = arith.maximumf %5, %6 : vector<8x128xf32>
    %c0_6 = arith.constant 0 : index
    %c0_7 = arith.constant 0 : index
    %8 = vector.load %arg3[%c0_6, %c0_7] : memref<128x128xf32, #tpu.memory_space<vmem>>, vector<128x128xf32>
    %c0_8 = arith.constant 0 : index
    %c0_9 = arith.constant 0 : index
    %9 = vector.load %arg4[%c0_8, %c0_9] : memref<1x128xf32, #tpu.memory_space<vmem>>, vector<1x128xf32>
    %cst_10 = arith.constant dense<0.000000e+00> : vector<8x128xf32>
    %10 = tpu.matmul %7, %8, %cst_10 {dimension_numbers = #tpu.dot_dimension_numbers<[1], [0], [0], [1], [0, 0, 1, 1], [], []>} : vector<8x128xf32>, vector<128x128xf32>, vector<8x128xf32> -> vector<8x128xf32>
    %11 = vector.broadcast %9 : vector<1x128xf32> to vector<8x128xf32>
    %12 = arith.addf %10, %11 : vector<8x128xf32>
    %cst_11 = arith.constant 0.000000e+00 : f32
    %13 = vector.broadcast %cst_11 : f32 to vector<8x128xf32>
    %14 = arith.maximumf %12, %13 : vector<8x128xf32>
    %c0_12 = arith.constant 0 : index
    %c0_13 = arith.constant 0 : index
    %15 = vector.load %arg5[%c0_12, %c0_13] : memref<128x128xf32, #tpu.memory_space<vmem>>, vector<128x128xf32>
    %c0_14 = arith.constant 0 : index
    %c0_15 = arith.constant 0 : index
    %16 = vector.load %arg6[%c0_14, %c0_15] : memref<1x128xf32, #tpu.memory_space<vmem>>, vector<1x128xf32>
    %cst_16 = arith.constant dense<0.000000e+00> : vector<8x128xf32>
    %17 = tpu.matmul %14, %15, %cst_16 {dimension_numbers = #tpu.dot_dimension_numbers<[1], [0], [0], [1], [0, 0, 1, 1], [], []>} : vector<8x128xf32>, vector<128x128xf32>, vector<8x128xf32> -> vector<8x128xf32>
    %18 = vector.broadcast %16 : vector<1x128xf32> to vector<8x128xf32>
    %19 = arith.addf %17, %18 : vector<8x128xf32>
    %c0_17 = arith.constant 0 : index
    %c0_18 = arith.constant 0 : index
    %20 = vector.load %arg7[%c0_17, %c0_18] : memref<8x128xf32, #tpu.memory_space<vmem>>, vector<8x128xf32>
    tpu.vector_store %arg7[%c0_17, %c0_18], %19 {strides = array<i32>} : memref<8x128xf32, #tpu.memory_space<vmem>>, vector<8x128xf32>,
    return
  }
}

</mosaic_0001>

<llo_original>
// kernel: mymodel_forward.1
$region0: #{mymodel_forward.1}
  #allocation0 [shape = 'u32[]', space=smem, size = 0x4, offset = 0x4, fixed_abs, tag = 'smem constant byte address 0x4 - core index']
  #allocation1 [shape = 'u32[144,128]{1,0:T(1,128)}', space=vmem, size = 0x12000, scoped, tag = 'internal scratch']
  %s0 = inlined_call_operand.vmem [shape: f32[8,2048], index: 0, kind: input, shape index: {}]
  %s1 = inlined_call_operand.hbm [shape: f32[2048,128], index: 1, kind: input, shape index: {}]
  %s2 = inlined_call_operand.vmem [shape: f32[1,128], index: 2, kind: input, shape index: {}]
  %s3 = inlined_call_operand.vmem [shape: f32[128,128], index: 3, kind: input, shape index: {}]
  %s4 = inlined_call_operand.vmem [shape: f32[1,128], index: 4, kind: input, shape index: {}]
  %s5 = inlined_call_operand.vmem [shape: f32[128,128], index: 5, kind: input, shape index: {}]
  %s6 = inlined_call_operand.vmem [shape: f32[1,128], index: 6, kind: input, shape index: {}]
  %s7 = inlined_call_operand.vmem [shape: f32[8,128], index: 7, kind: output, shape index: {}]
  %s8 = sld [smem:[#allocation0]]
  $region42: #{mymodel_forward.1} parent=0
    _
  %s10 = ssub.s32 1, %s8
  %s11 = scalar_select 0, %s10, %s8
  $region1: #{mymodel_forward.1} parent=0
    #allocation2 [shape = 'u8[1048576]{0}', space=vmem, size = 0x100000, scoped, tag = 'input window, operand 1, single buffered']
    #allocation3 [shape = 's32[1]{0}', space=sflag, size = 0x4, scoped, tag = 'scoped memory for mymodel_forward.1']
    %12 = vsyncpa [#allocation3], 0
    // Predicated region
    $region2: #{mymodel_forward.1} parent=1 // pred_check
      _
    $region3: #{mymodel_forward.1} parent=1 // pred_check_branch
      %14 = sbr.rel (0) target = $region5
    $region4: #{mymodel_forward.1} parent=1 // pred_region
      _
    $region5: #{mymodel_forward.1} parent=1 // pred_fallthru
      _
    // Predicated region
    $region6: #{mymodel_forward.1} parent=1 // pred_check
      _
    $region7: #{mymodel_forward.1} parent=1 // pred_check_branch
      %16 = sbr.rel (0) target = $region9
    $region8: #{mymodel_forward.1} parent=1 // pred_region
      %s18 = ssub.s32 32768, 32768
      %19 = vsyncadd [#allocation3], %s18
      %s20 = sshll.u32 [#allocation2], 4
      %s21 = int_to_ptr.vmem [resolvable:$true] %s20
      %26 = dma.hbm_to_vmem [thread:$0]  %s1, 32768, %s21, [#allocation3], 128, 128, 8
    $region9: #{mymodel_forward.1} parent=1 // pred_fallthru
      _
    // Predicated region
    $region10: #{mymodel_forward.1} parent=1 // pred_check
      _
    $region11: #{mymodel_forward.1} parent=1 // pred_check_branch
      %28 = sbr.rel (0) target = $region13
    $region12: #{mymodel_forward.1} parent=1 // pred_region
      _
    $region13: #{mymodel_forward.1} parent=1 // pred_fallthru
      _
    // Predicated region
    $region14: #{mymodel_forward.1} parent=1 // pred_check
      _
    $region15: #{mymodel_forward.1} parent=1 // pred_check_branch
      %30 = sbr.rel (0) target = $region17
    $region16: #{mymodel_forward.1} parent=1 // pred_region
      _
    $region17: #{mymodel_forward.1} parent=1 // pred_fallthru
      _
    // Predicated region
    $region18: #{mymodel_forward.1} parent=1 // pred_check
      _
    $region19: #{mymodel_forward.1} parent=1 // pred_check_branch
      %32 = sbr.rel (0) target = $region21
    $region20: #{mymodel_forward.1} parent=1 // pred_region
      _
    $region21: #{mymodel_forward.1} parent=1 // pred_fallthru
      _
    // Predicated region
    $region22: #{mymodel_forward.1} parent=1 // pred_check
      _
    $region23: #{mymodel_forward.1} parent=1 // pred_check_branch
      %34 = sbr.rel (0) target = $region25
    $region24: #{mymodel_forward.1} parent=1 // pred_region
      _
    $region25: #{mymodel_forward.1} parent=1 // pred_fallthru
      _
    // Predicated region
    $region26: #{mymodel_forward.1} parent=1 // pred_check
      _
    $region27: #{mymodel_forward.1} parent=1 // pred_check_branch
      %36 = sbr.rel (0) target = $region29
    $region28: #{mymodel_forward.1} parent=1 // pred_region
      _
    $region29: #{mymodel_forward.1} parent=1 // pred_fallthru
      _
    // Predicated region
    $region30: #{mymodel_forward.1} parent=1 // pred_check
      _
    $region31: #{mymodel_forward.1} parent=1 // pred_check_branch
      %38 = sbr.rel (0) target = $region33
    $region32: #{mymodel_forward.1} parent=1 // pred_region
      %39 = dma.done [#allocation3], 32768
    $region33: #{mymodel_forward.1} parent=1 // pred_fallthru
      _
    %v40 = vld [vmem:[%s0] sm:$0xff]
    %v41 = vld [vmem:[%s0 + $0x8] sm:$0xff]
    %v42 = vld [vmem:[%s0 + $0x10] sm:$0xff]
    %v43 = vld [vmem:[%s0 + $0x18] sm:$0xff]
    %v44 = vld [vmem:[%s0 + $0x20] sm:$0xff]
    %v45 = vld [vmem:[%s0 + $0x28] sm:$0xff]
    %v46 = vld [vmem:[%s0 + $0x30] sm:$0xff]
    %v47 = vld [vmem:[%s0 + $0x38] sm:$0xff]
    %v48 = vld [vmem:[%s0 + $0x40] sm:$0xff]
    %v49 = vld [vmem:[%s0 + $0x48] sm:$0xff]
    %v50 = vld [vmem:[%s0 + $0x50] sm:$0xff]
    %v51 = vld [vmem:[%s0 + $0x58] sm:$0xff]
    %v52 = vld [vmem:[%s0 + $0x60] sm:$0xff]
    %v53 = vld [vmem:[%s0 + $0x68] sm:$0xff]
    %v54 = vld [vmem:[%s0 + $0x70] sm:$0xff]
    %v55 = vld [vmem:[%s0 + $0x78] sm:$0xff]
    %v56 = vld [vmem:[#allocation2] sm:$0xff]
    %v57 = vld [vmem:[#allocation2 + $0x8] sm:$0xff]
    %v58 = vld [vmem:[#allocation2 + $0x10] sm:$0xff]
    %v59 = vld [vmem:[#allocation2 + $0x18] sm:$0xff]
    %v60 = vld [vmem:[#allocation2 + $0x20] sm:$0xff]
    %v61 = vld [vmem:[#allocation2 + $0x28] sm:$0xff]
    %v62 = vld [vmem:[#allocation2 + $0x30] sm:$0xff]
    %v63 = vld [vmem:[#allocation2 + $0x38] sm:$0xff]
    %v64 = vld [vmem:[#allocation2 + $0x40] sm:$0xff]
    %v65 = vld [vmem:[#allocation2 + $0x48] sm:$0xff]
    %v66 = vld [vmem:[#allocation2 + $0x50] sm:$0xff]
    %v67 = vld [vmem:[#allocation2 + $0x58] sm:$0xff]
    %v68 = vld [vmem:[#allocation2 + $0x60] sm:$0xff]
    %v69 = vld [vmem:[#allocation2 + $0x68] sm:$0xff]
    %v70 = vld [vmem:[#allocation2 + $0x70] sm:$0xff]
    %v71 = vld [vmem:[#allocation2 + $0x78] sm:$0xff]
    %v72 = vld [vmem:[#allocation2 + $0x80] sm:$0xff]
    %v73 = vld [vmem:[#allocation2 + $0x88] sm:$0xff]
    %v74 = vld [vmem:[#allocation2 + $0x90] sm:$0xff]
    %v75 = vld [vmem:[#allocation2 + $0x98] sm:$0xff]
    %v76 = vld [vmem:[#allocation2 + $0xa0] sm:$0xff]
    %v77 = vld [vmem:[#allocation2 + $0xa8] sm:$0xff]
    %v78 = vld [vmem:[#allocation2 + $0xb0] sm:$0xff]
    %v79 = vld [vmem:[#allocation2 + $0xb8] sm:$0xff]
    %v80 = vld [vmem:[#allocation2 + $0xc0] sm:$0xff]
    %v81 = vld [vmem:[#allocation2 + $0xc8] sm:$0xff]
    %v82 = vld [vmem:[#allocation2 + $0xd0] sm:$0xff]
    %v83 = vld [vmem:[#allocation2 + $0xd8] sm:$0xff]
    %v84 = vld [vmem:[#allocation2 + $0xe0] sm:$0xff]
    %v85 = vld [vmem:[#allocation2 + $0xe8] sm:$0xff]
    %v86 = vld [vmem:[#allocation2 + $0xf0] sm:$0xff]
    %v87 = vld [vmem:[#allocation2 + $0xf8] sm:$0xff]
    %v88 = vld [vmem:[#allocation2 + $0x100] sm:$0xff]
    %v89 = vld [vmem:[#allocation2 + $0x108] sm:$0xff]
    %v90 = vld [vmem:[#allocation2 + $0x110] sm:$0xff]
    %v91 = vld [vmem:[#allocation2 + $0x118] sm:$0xff]
    %v92 = vld [vmem:[#allocation2 + $0x120] sm:$0xff]
    %v93 = vld [vmem:[#allocation2 + $0x128] sm:$0xff]
    %v94 = vld [vmem:[#allocation2 + $0x130] sm:$0xff]
    %v95 = vld [vmem:[#allocation2 + $0x138] sm:$0xff]
    %v96 = vld [vmem:[#allocation2 + $0x140] sm:$0xff]
    %v97 = vld [vmem:[#allocation2 + $0x148] sm:$0xff]
    %v98 = vld [vmem:[#allocation2 + $0x150] sm:$0xff]
    %v99 = vld [vmem:[#allocation2 + $0x158] sm:$0xff]
    %v100 = vld [vmem:[#allocation2 + $0x160] sm:$0xff]
    %v101 = vld [vmem:[#allocation2 + $0x168] sm:$0xff]
    %v102 = vld [vmem:[#allocation2 + $0x170] sm:$0xff]
    %v103 = vld [vmem:[#allocation2 + $0x178] sm:$0xff]
    %v104 = vld [vmem:[#allocation2 + $0x180] sm:$0xff]
    %v105 = vld [vmem:[#allocation2 + $0x188] sm:$0xff]
    %v106 = vld [vmem:[#allocation2 + $0x190] sm:$0xff]
    %v107 = vld [vmem:[#allocation2 + $0x198] sm:$0xff]
    %v108 = vld [vmem:[#allocation2 + $0x1a0] sm:$0xff]
    %v109 = vld [vmem:[#allocation2 + $0x1a8] sm:$0xff]
    %v110 = vld [vmem:[#allocation2 + $0x1b0] sm:$0xff]
    %v111 = vld [vmem:[#allocation2 + $0x1b8] sm:$0xff]
    %v112 = vld [vmem:[#allocation2 + $0x1c0] sm:$0xff]
    %v113 = vld [vmem:[#allocation2 + $0x1c8] sm:$0xff]
    %v114 = vld [vmem:[#allocation2 + $0x1d0] sm:$0xff]
    %v115 = vld [vmem:[#allocation2 + $0x1d8] sm:$0xff]
    %v116 = vld [vmem:[#allocation2 + $0x1e0] sm:$0xff]
    %v117 = vld [vmem:[#allocation2 + $0x1e8] sm:$0xff]
    %v118 = vld [vmem:[#allocation2 + $0x1f0] sm:$0xff]
    %v119 = vld [vmem:[#allocation2 + $0x1f8] sm:$0xff]
    %v120 = vld [vmem:[#allocation2 + $0x200] sm:$0xff]
    %v121 = vld [vmem:[#allocation2 + $0x208] sm:$0xff]
    %v122 = vld [vmem:[#allocation2 + $0x210] sm:$0xff]
    %v123 = vld [vmem:[#allocation2 + $0x218] sm:$0xff]
    %v124 = vld [vmem:[#allocation2 + $0x220] sm:$0xff]
    %v125 = vld [vmem:[#allocation2 + $0x228] sm:$0xff]
    %v126 = vld [vmem:[#allocation2 + $0x230] sm:$0xff]
    %v127 = vld [vmem:[#allocation2 + $0x238] sm:$0xff]
    %v128 = vld [vmem:[#allocation2 + $0x240] sm:$0xff]
    %v129 = vld [vmem:[#allocation2 + $0x248] sm:$0xff]
    %v130 = vld [vmem:[#allocation2 + $0x250] sm:$0xff]
    %v131 = vld [vmem:[#allocation2 + $0x258] sm:$0xff]
    %v132 = vld [vmem:[#allocation2 + $0x260] sm:$0xff]
    %v133 = vld [vmem:[#allocation2 + $0x268] sm:$0xff]
    %v134 = vld [vmem:[#allocation2 + $0x270] sm:$0xff]
    %v135 = vld [vmem:[#allocation2 + $0x278] sm:$0xff]
    %v136 = vld [vmem:[#allocation2 + $0x280] sm:$0xff]
    %v137 = vld [vmem:[#allocation2 + $0x288] sm:$0xff]
    %v138 = vld [vmem:[#allocation2 + $0x290] sm:$0xff]
    %v139 = vld [vmem:[#allocation2 + $0x298] sm:$0xff]
    %v140 = vld [vmem:[#allocation2 + $0x2a0] sm:$0xff]
    %v141 = vld [vmem:[#allocation2 + $0x2a8] sm:$0xff]
    %v142 = vld [vmem:[#allocation2 + $0x2b0] sm:$0xff]
    %v143 = vld [vmem:[#allocation2 + $0x2b8] sm:$0xff]
    %v144 = vld [vmem:[#allocation2 + $0x2c0] sm:$0xff]
    %v145 = vld [vmem:[#allocation2 + $0x2c8] sm:$0xff]
    %v146 = vld [vmem:[#allocation2 + $0x2d0] sm:$0xff]
    %v147 = vld [vmem:[#allocation2 + $0x2d8] sm:$0xff]
    %v148 = vld [vmem:[#allocation2 + $0x2e0] sm:$0xff]
    %v149 = vld [vmem:[#allocation2 + $0x2e8] sm:$0xff]
    %v150 = vld [vmem:[#allocation2 + $0x2f0] sm:$0xff]
    %v151 = vld [vmem:[#allocation2 + $0x2f8] sm:$0xff]
    %v152 = vld [vmem:[#allocation2 + $0x300] sm:$0xff]
    %v153 = vld [vmem:[#allocation2 + $0x308] sm:$0xff]
    %v154 = vld [vmem:[#allocation2 + $0x310] sm:$0xff]
    %v155 = vld [vmem:[#allocation2 + $0x318] sm:$0xff]
    %v156 = vld [vmem:[#allocation2 + $0x320] sm:$0xff]
    %v157 = vld [vmem:[#allocation2 + $0x328] sm:$0xff]
    %v158 = vld [vmem:[#allocation2 + $0x330] sm:$0xff]
    %v159 = vld [vmem:[#allocation2 + $0x338] sm:$0xff]
    %v160 = vld [vmem:[#allocation2 + $0x340] sm:$0xff]
    %v161 = vld [vmem:[#allocation2 + $0x348] sm:$0xff]
    %v162 = vld [vmem:[#allocation2 + $0x350] sm:$0xff]
    %v163 = vld [vmem:[#allocation2 + $0x358] sm:$0xff]
    %v164 = vld [vmem:[#allocation2 + $0x360] sm:$0xff]
    %v165 = vld [vmem:[#allocation2 + $0x368] sm:$0xff]
    %v166 = vld [vmem:[#allocation2 + $0x370] sm:$0xff]
    %v167 = vld [vmem:[#allocation2 + $0x378] sm:$0xff]
    %v168 = vld [vmem:[#allocation2 + $0x380] sm:$0xff]
    %v169 = vld [vmem:[#allocation2 + $0x388] sm:$0xff]
    %v170 = vld [vmem:[#allocation2 + $0x390] sm:$0xff]
    %v171 = vld [vmem:[#allocation2 + $0x398] sm:$0xff]
    %v172 = vld [vmem:[#allocation2 + $0x3a0] sm:$0xff]
    %v173 = vld [vmem:[#allocation2 + $0x3a8] sm:$0xff]
    %v174 = vld [vmem:[#allocation2 + $0x3b0] sm:$0xff]
    %v175 = vld [vmem:[#allocation2 + $0x3b8] sm:$0xff]
    %v176 = vld [vmem:[#allocation2 + $0x3c0] sm:$0xff]
    %v177 = vld [vmem:[#allocation2 + $0x3c8] sm:$0xff]
    %v178 = vld [vmem:[#allocation2 + $0x3d0] sm:$0xff]
    %v179 = vld [vmem:[#allocation2 + $0x3d8] sm:$0xff]
    %v180 = vld [vmem:[#allocation2 + $0x3e0] sm:$0xff]
    %v181 = vld [vmem:[#allocation2 + $0x3e8] sm:$0xff]
    %v182 = vld [vmem:[#allocation2 + $0x3f0] sm:$0xff]
    %v183 = vld [vmem:[#allocation2 + $0x3f8] sm:$0xff]
    %v184 = vld [vmem:[#allocation2 + $0x400] sm:$0xff]
    %v185 = vld [vmem:[#allocation2 + $0x408] sm:$0xff]
    %v186 = vld [vmem:[#allocation2 + $0x410] sm:$0xff]
    %v187 = vld [vmem:[#allocation2 + $0x418] sm:$0xff]
    %v188 = vld [vmem:[#allocation2 + $0x420] sm:$0xff]
    %v189 = vld [vmem:[#allocation2 + $0x428] sm:$0xff]
    %v190 = vld [vmem:[#allocation2 + $0x430] sm:$0xff]
    %v191 = vld [vmem:[#allocation2 + $0x438] sm:$0xff]
    %v192 = vld [vmem:[#allocation2 + $0x440] sm:$0xff]
    %v193 = vld [vmem:[#allocation2 + $0x448] sm:$0xff]
    %v194 = vld [vmem:[#allocation2 + $0x450] sm:$0xff]
    %v195 = vld [vmem:[#allocation2 + $0x458] sm:$0xff]
    %v196 = vld [vmem:[#allocation2 + $0x460] sm:$0xff]
    %v197 = vld [vmem:[#allocation2 + $0x468] sm:$0xff]
    %v198 = vld [vmem:[#allocation2 + $0x470] sm:$0xff]
    %v199 = vld [vmem:[#allocation2 + $0x478] sm:$0xff]
    %v200 = vld [vmem:[#allocation2 + $0x480] sm:$0xff]
    %v201 = vld [vmem:[#allocation2 + $0x488] sm:$0xff]
    %v202 = vld [vmem:[#allocation2 + $0x490] sm:$0xff]
    %v203 = vld [vmem:[#allocation2 + $0x498] sm:$0xff]
    %v204 = vld [vmem:[#allocation2 + $0x4a0] sm:$0xff]
    %v205 = vld [vmem:[#allocation2 + $0x4a8] sm:$0xff]
    %v206 = vld [vmem:[#allocation2 + $0x4b0] sm:$0xff]
    %v207 = vld [vmem:[#allocation2 + $0x4b8] sm:$0xff]
    %v208 = vld [vmem:[#allocation2 + $0x4c0] sm:$0xff]
    %v209 = vld [vmem:[#allocation2 + $0x4c8] sm:$0xff]
    %v210 = vld [vmem:[#allocation2 + $0x4d0] sm:$0xff]
    %v211 = vld [vmem:[#allocation2 + $0x4d8] sm:$0xff]
    %v212 = vld [vmem:[#allocation2 + $0x4e0] sm:$0xff]
    %v213 = vld [vmem:[#allocation2 + $0x4e8] sm:$0xff]
    %v214 = vld [vmem:[#allocation2 + $0x4f0] sm:$0xff]
    %v215 = vld [vmem:[#allocation2 + $0x4f8] sm:$0xff]
    %v216 = vld [vmem:[#allocation2 + $0x500] sm:$0xff]
    %v217 = vld [vmem:[#allocation2 + $0x508] sm:$0xff]
    %v218 = vld [vmem:[#allocation2 + $0x510] sm:$0xff]
    %v219 = vld [vmem:[#allocation2 + $0x518] sm:$0xff]
    %v220 = vld [vmem:[#allocation2 + $0x520] sm:$0xff]
    %v221 = vld [vmem:[#allocation2 + $0x528] sm:$0xff]
    %v222 = vld [vmem:[#allocation2 + $0x530] sm:$0xff]
    %v223 = vld [vmem:[#allocation2 + $0x538] sm:$0xff]
    %v224 = vld [vmem:[#allocation2 + $0x540] sm:$0xff]
    %v225 = vld [vmem:[#allocation2 + $0x548] sm:$0xff]
    %v226 = vld [vmem:[#allocation2 + $0x550] sm:$0xff]
    %v227 = vld [vmem:[#allocation2 + $0x558] sm:$0xff]
    %v228 = vld [vmem:[#allocation2 + $0x560] sm:$0xff]
    %v229 = vld [vmem:[#allocation2 + $0x568] sm:$0xff]
    %v230 = vld [vmem:[#allocation2 + $0x570] sm:$0xff]
    %v231 = vld [vmem:[#allocation2 + $0x578] sm:$0xff]
    %v232 = vld [vmem:[#allocation2 + $0x580] sm:$0xff]
    %v233 = vld [vmem:[#allocation2 + $0x588] sm:$0xff]
    %v234 = vld [vmem:[#allocation2 + $0x590] sm:$0xff]
    %v235 = vld [vmem:[#allocation2 + $0x598] sm:$0xff]
    %v236 = vld [vmem:[#allocation2 + $0x5a0] sm:$0xff]
    %v237 = vld [vmem:[#allocation2 + $0x5a8] sm:$0xff]
    %v238 = vld [vmem:[#allocation2 + $0x5b0] sm:$0xff]
    %v239 = vld [vmem:[#allocation2 + $0x5b8] sm:$0xff]
    %v240 = vld [vmem:[#allocation2 + $0x5c0] sm:$0xff]
    %v241 = vld [vmem:[#allocation2 + $0x5c8] sm:$0xff]
    %v242 = vld [vmem:[#allocation2 + $0x5d0] sm:$0xff]
    %v243 = vld [vmem:[#allocation2 + $0x5d8] sm:$0xff]
    %v244 = vld [vmem:[#allocation2 + $0x5e0] sm:$0xff]
    %v245 = vld [vmem:[#allocation2 + $0x5e8] sm:$0xff]
    %v246 = vld [vmem:[#allocation2 + $0x5f0] sm:$0xff]
    %v247 = vld [vmem:[#allocation2 + $0x5f8] sm:$0xff]
    %v248 = vld [vmem:[#allocation2 + $0x600] sm:$0xff]
    %v249 = vld [vmem:[#allocation2 + $0x608] sm:$0xff]
    %v250 = vld [vmem:[#allocation2 + $0x610] sm:$0xff]
    %v251 = vld [vmem:[#allocation2 + $0x618] sm:$0xff]
    %v252 = vld [vmem:[#allocation2 + $0x620] sm:$0xff]
    %v253 = vld [vmem:[#allocation2 + $0x628] sm:$0xff]
    %v254 = vld [vmem:[#allocation2 + $0x630] sm:$0xff]
    %v255 = vld [vmem:[#allocation2 + $0x638] sm:$0xff]
    %v256 = vld [vmem:[#allocation2 + $0x640] sm:$0xff]
    %v257 = vld [vmem:[#allocation2 + $0x648] sm:$0xff]
    %v258 = vld [vmem:[#allocation2 + $0x650] sm:$0xff]
    %v259 = vld [vmem:[#allocation2 + $0x658] sm:$0xff]
    %v260 = vld [vmem:[#allocation2 + $0x660] sm:$0xff]
    %v261 = vld [vmem:[#allocation2 + $0x668] sm:$0xff]
    %v262 = vld [vmem:[#allocation2 + $0x670] sm:$0xff]
    %v263 = vld [vmem:[#allocation2 + $0x678] sm:$0xff]
    %v264 = vld [vmem:[#allocation2 + $0x680] sm:$0xff]
    %v265 = vld [vmem:[#allocation2 + $0x688] sm:$0xff]
    %v266 = vld [vmem:[#allocation2 + $0x690] sm:$0xff]
    %v267 = vld [vmem:[#allocation2 + $0x698] sm:$0xff]
    %v268 = vld [vmem:[#allocation2 + $0x6a0] sm:$0xff]
    %v269 = vld [vmem:[#allocation2 + $0x6a8] sm:$0xff]
    %v270 = vld [vmem:[#allocation2 + $0x6b0] sm:$0xff]
    %v271 = vld [vmem:[#allocation2 + $0x6b8] sm:$0xff]
    %v272 = vld [vmem:[#allocation2 + $0x6c0] sm:$0xff]
    %v273 = vld [vmem:[#allocation2 + $0x6c8] sm:$0xff]
    %v274 = vld [vmem:[#allocation2 + $0x6d0] sm:$0xff]
    %v275 = vld [vmem:[#allocation2 + $0x6d8] sm:$0xff]
    %v276 = vld [vmem:[#allocation2 + $0x6e0] sm:$0xff]
    %v277 = vld [vmem:[#allocation2 + $0x6e8] sm:$0xff]
    %v278 = vld [vmem:[#allocation2 + $0x6f0] sm:$0xff]
    %v279 = vld [vmem:[#allocation2 + $0x6f8] sm:$0xff]
    %v280 = vld [vmem:[#allocation2 + $0x700] sm:$0xff]
    %v281 = vld [vmem:[#allocation2 + $0x708] sm:$0xff]
    %v282 = vld [vmem:[#allocation2 + $0x710] sm:$0xff]
    %v283 = vld [vmem:[#allocation2 + $0x718] sm:$0xff]
    %v284 = vld [vmem:[#allocation2 + $0x720] sm:$0xff]
    %v285 = vld [vmem:[#allocation2 + $0x728] sm:$0xff]
    %v286 = vld [vmem:[#allocation2 + $0x730] sm:$0xff]
    %v287 = vld [vmem:[#allocation2 + $0x738] sm:$0xff]
    %v288 = vld [vmem:[#allocation2 + $0x740] sm:$0xff]
    %v289 = vld [vmem:[#allocation2 + $0x748] sm:$0xff]
    %v290 = vld [vmem:[#allocation2 + $0x750] sm:$0xff]
    %v291 = vld [vmem:[#allocation2 + $0x758] sm:$0xff]
    %v292 = vld [vmem:[#allocation2 + $0x760] sm:$0xff]
    %v293 = vld [vmem:[#allocation2 + $0x768] sm:$0xff]
    %v294 = vld [vmem:[#allocation2 + $0x770] sm:$0xff]
    %v295 = vld [vmem:[#allocation2 + $0x778] sm:$0xff]
    %v296 = vld [vmem:[#allocation2 + $0x780] sm:$0xff]
    %v297 = vld [vmem:[#allocation2 + $0x788] sm:$0xff]
    %v298 = vld [vmem:[#allocation2 + $0x790] sm:$0xff]
    %v299 = vld [vmem:[#allocation2 + $0x798] sm:$0xff]
    %v300 = vld [vmem:[#allocation2 + $0x7a0] sm:$0xff]
    %v301 = vld [vmem:[#allocation2 + $0x7a8] sm:$0xff]
    %v302 = vld [vmem:[#allocation2 + $0x7b0] sm:$0xff]
    %v303 = vld [vmem:[#allocation2 + $0x7b8] sm:$0xff]
    %v304 = vld [vmem:[#allocation2 + $0x7c0] sm:$0xff]
    %v305 = vld [vmem:[#allocation2 + $0x7c8] sm:$0xff]
    %v306 = vld [vmem:[#allocation2 + $0x7d0] sm:$0xff]
    %v307 = vld [vmem:[#allocation2 + $0x7d8] sm:$0xff]
    %v308 = vld [vmem:[#allocation2 + $0x7e0] sm:$0xff]
    %v309 = vld [vmem:[#allocation2 + $0x7e8] sm:$0xff]
    %v310 = vld [vmem:[#allocation2 + $0x7f0] sm:$0xff]
    %v311 = vld [vmem:[#allocation2 + $0x7f8] sm:$0xff]
    %v312 = vld [vmem:[%s2] sm:$0x1]
    %v314 = vlaneseq
    %v315 = vshrl.u32 %v314, 7
    %v316 = vsub.s32 0, %v315
    %v317 = vrot.slane %v312, %v316
    %319 = vmatprep.subr.mxu0 0.0
    %320 = vmatpush1.msra.mxu0 %v56
    %321 = vmatprep.subr.mxu0 0.0
    %322 = vmatpush1.msra.mxu0 %v57
    %323 = vmatprep.subr.mxu0 0.0
    %324 = vmatpush1.msra.mxu0 %v58
    %325 = vmatprep.subr.mxu0 0.0
    %326 = vmatpush1.msra.mxu0 %v59
    %327 = vmatprep.subr.mxu0 0.0
    %328 = vmatpush1.msra.mxu0 %v60
    %329 = vmatprep.subr.mxu0 0.0
    %330 = vmatpush1.msra.mxu0 %v61
    %331 = vmatprep.subr.mxu0 0.0
    %332 = vmatpush1.msra.mxu0 %v62
    %333 = vmatprep.subr.mxu0 0.0
    %334 = vmatpush1.msra.mxu0 %v63
    %335 = vmatprep.subr.mxu0 0.0
    %336 = vmatpush1.msra.mxu0 %v64
    %337 = vmatprep.subr.mxu0 0.0
    %338 = vmatpush1.msra.mxu0 %v65
    %339 = vmatprep.subr.mxu0 0.0
    %340 = vmatpush1.msra.mxu0 %v66
    %341 = vmatprep.subr.mxu0 0.0
    %342 = vmatpush1.msra.mxu0 %v67
    %343 = vmatprep.subr.mxu0 0.0
    %344 = vmatpush1.msra.mxu0 %v68
    %345 = vmatprep.subr.mxu0 0.0
    %346 = vmatpush1.msra.mxu0 %v69
    %347 = vmatprep.subr.mxu0 0.0
    %348 = vmatpush1.msra.mxu0 %v70
    %349 = vmatprep.subr.mxu0 0.0
    %350 = vmatpush1.msra.mxu0 %v71
    %351 = vmatprep.subr.mxu0 0.0
    %352 = vmatpush1.msra.mxu0 %v72
    %353 = vmatprep.subr.mxu0 0.0
    %354 = vmatpush1.msra.mxu0 %v73
    %355 = vmatprep.subr.mxu0 0.0
    %356 = vmatpush1.msra.mxu0 %v74
    %357 = vmatprep.subr.mxu0 0.0
    %358 = vmatpush1.msra.mxu0 %v75
    %359 = vmatprep.subr.mxu0 0.0
    %360 = vmatpush1.msra.mxu0 %v76
    %361 = vmatprep.subr.mxu0 0.0
    %362 = vmatpush1.msra.mxu0 %v77
    %363 = vmatprep.subr.mxu0 0.0
    %364 = vmatpush1.msra.mxu0 %v78
    %365 = vmatprep.subr.mxu0 0.0
    %366 = vmatpush1.msra.mxu0 %v79
    %367 = vmatprep.subr.mxu0 0.0
    %368 = vmatpush1.msra.mxu0 %v80
    %369 = vmatprep.subr.mxu0 0.0
    %370 = vmatpush1.msra.mxu0 %v81
    %371 = vmatprep.subr.mxu0 0.0
    %372 = vmatpush1.msra.mxu0 %v82
    %373 = vmatprep.subr.mxu0 0.0
    %374 = vmatpush1.msra.mxu0 %v83
    %375 = vmatprep.subr.mxu0 0.0
    %376 = vmatpush1.msra.mxu0 %v84
    %377 = vmatprep.subr.mxu0 0.0
    %378 = vmatpush1.msra.mxu0 %v85
    %379 = vmatprep.subr.mxu0 0.0
    %380 = vmatpush1.msra.mxu0 %v86
    %381 = vmatprep.subr.mxu0 0.0
    %382 = vmatpush1.msra.mxu0 %v87
    %383 = vmatprep.mubr.f32.mxu0 %v41
    %384 = vmatmul.mubr.f32.gmra.mrb[0].mxu0 %v40
    %v385 = vpop.f32.mrb[0].mxu0
    %v386 = vadd.f32 %v317, %v385
    %v387 = vpop.f32.mrb[0].mxu0
    %388 = vdwg.mxu0
    %389 = vmatprep.subr.mxu0 0.0
    %390 = vmatpush1.msra.mxu0 %v88
    %391 = vmatprep.subr.mxu0 0.0
    %392 = vmatpush1.msra.mxu0 %v89
    %393 = vmatprep.subr.mxu0 0.0
    %394 = vmatpush1.msra.mxu0 %v90
    %395 = vmatprep.subr.mxu0 0.0
    %396 = vmatpush1.msra.mxu0 %v91
    %397 = vmatprep.subr.mxu0 0.0
    %398 = vmatpush1.msra.mxu0 %v92
    %399 = vmatprep.subr.mxu0 0.0
    %400 = vmatpush1.msra.mxu0 %v93
    %401 = vmatprep.subr.mxu0 0.0
    %402 = vmatpush1.msra.mxu0 %v94
    %403 = vmatprep.subr.mxu0 0.0
    %404 = vmatpush1.msra.mxu0 %v95
    %405 = vmatprep.subr.mxu0 0.0
    %406 = vmatpush1.msra.mxu0 %v96
    %407 = vmatprep.subr.mxu0 0.0
    %408 = vmatpush1.msra.mxu0 %v97
    %409 = vmatprep.subr.mxu0 0.0
    %410 = vmatpush1.msra.mxu0 %v98
    %411 = vmatprep.subr.mxu0 0.0
    %412 = vmatpush1.msra.mxu0 %v99
    %413 = vmatprep.subr.mxu0 0.0
    %414 = vmatpush1.msra.mxu0 %v100
    %415 = vmatprep.subr.mxu0 0.0
    %416 = vmatpush1.msra.mxu0 %v101
    %417 = vmatprep.subr.mxu0 0.0
    %418 = vmatpush1.msra.mxu0 %v102
    %419 = vmatprep.subr.mxu0 0.0
    %420 = vmatpush1.msra.mxu0 %v103
    %421 = vmatprep.subr.mxu0 0.0
    %422 = vmatpush1.msra.mxu0 %v104
    %423 = vmatprep.subr.mxu0 0.0
    %424 = vmatpush1.msra.mxu0 %v105
    %425 = vmatprep.subr.mxu0 0.0
    %426 = vmatpush1.msra.mxu0 %v106
    %427 = vmatprep.subr.mxu0 0.0
    %428 = vmatpush1.msra.mxu0 %v107
    %429 = vmatprep.subr.mxu0 0.0
    %430 = vmatpush1.msra.mxu0 %v108
    %431 = vmatprep.subr.mxu0 0.0
    %432 = vmatpush1.msra.mxu0 %v109
    %433 = vmatprep.subr.mxu0 0.0
    %434 = vmatpush1.msra.mxu0 %v110
    %435 = vmatprep.subr.mxu0 0.0
    %436 = vmatpush1.msra.mxu0 %v111
    %437 = vmatprep.subr.mxu0 0.0
    %438 = vmatpush1.msra.mxu0 %v112
    %439 = vmatprep.subr.mxu0 0.0
    %440 = vmatpush1.msra.mxu0 %v113
    %441 = vmatprep.subr.mxu0 0.0
    %442 = vmatpush1.msra.mxu0 %v114
    %443 = vmatprep.subr.mxu0 0.0
    %444 = vmatpush1.msra.mxu0 %v115
    %445 = vmatprep.subr.mxu0 0.0
    %446 = vmatpush1.msra.mxu0 %v116
    %447 = vmatprep.subr.mxu0 0.0
    %448 = vmatpush1.msra.mxu0 %v117
    %449 = vmatprep.subr.mxu0 0.0
    %450 = vmatpush1.msra.mxu0 %v118
    %451 = vmatprep.subr.mxu0 0.0
    %452 = vmatpush1.msra.mxu0 %v119
    %453 = vmatprep.mubr.f32.mxu0 %v43
    %454 = vmatmul.mubr.f32.gmra.mrb[0].mxu0 %v42
    %v455 = vpop.f32.mrb[0].mxu0
    %v456 = vadd.f32 %v386, %v455
    %v457 = vpop.f32.mrb[0].mxu0
    %458 = vdwg.mxu0
    %459 = vmatprep.subr.mxu0 0.0
    %460 = vmatpush1.msra.mxu0 %v120
    %461 = vmatprep.subr.mxu0 0.0
    %462 = vmatpush1.msra.mxu0 %v121
    %463 = vmatprep.subr.mxu0 0.0
    %464 = vmatpush1.msra.mxu0 %v122
    %465 = vmatprep.subr.mxu0 0.0
    %466 = vmatpush1.msra.mxu0 %v123
    %467 = vmatprep.subr.mxu0 0.0
    %468 = vmatpush1.msra.mxu0 %v124
    %469 = vmatprep.subr.mxu0 0.0
    %470 = vmatpush1.msra.mxu0 %v125
    %471 = vmatprep.subr.mxu0 0.0
    %472 = vmatpush1.msra.mxu0 %v126
    %473 = vmatprep.subr.mxu0 0.0
    %474 = vmatpush1.msra.mxu0 %v127
    %475 = vmatprep.subr.mxu0 0.0
    %476 = vmatpush1.msra.mxu0 %v128
    %477 = vmatprep.subr.mxu0 0.0
    %478 = vmatpush1.msra.mxu0 %v129
    %479 = vmatprep.subr.mxu0 0.0
    %480 = vmatpush1.msra.mxu0 %v130
    %481 = vmatprep.subr.mxu0 0.0
    %482 = vmatpush1.msra.mxu0 %v131
    %483 = vmatprep.subr.mxu0 0.0
    %484 = vmatpush1.msra.mxu0 %v132
    %485 = vmatprep.subr.mxu0 0.0
    %486 = vmatpush1.msra.mxu0 %v133
    %487 = vmatprep.subr.mxu0 0.0
    %488 = vmatpush1.msra.mxu0 %v134
    %489 = vmatprep.subr.mxu0 0.0
    %490 = vmatpush1.msra.mxu0 %v135
    %491 = vmatprep.subr.mxu0 0.0
    %492 = vmatpush1.msra.mxu0 %v136
    %493 = vmatprep.subr.mxu0 0.0
    %494 = vmatpush1.msra.mxu0 %v137
    %495 = vmatprep.subr.mxu0 0.0
    %496 = vmatpush1.msra.mxu0 %v138
    %497 = vmatprep.subr.mxu0 0.0
    %498 = vmatpush1.msra.mxu0 %v139
    %499 = vmatprep.subr.mxu0 0.0
    %500 = vmatpush1.msra.mxu0 %v140
    %501 = vmatprep.subr.mxu0 0.0
    %502 = vmatpush1.msra.mxu0 %v141
    %503 = vmatprep.subr.mxu0 0.0
    %504 = vmatpush1.msra.mxu0 %v142
    %505 = vmatprep.subr.mxu0 0.0
    %506 = vmatpush1.msra.mxu0 %v143
    %507 = vmatprep.subr.mxu0 0.0
    %508 = vmatpush1.msra.mxu0 %v144
    %509 = vmatprep.subr.mxu0 0.0
    %510 = vmatpush1.msra.mxu0 %v145
    %511 = vmatprep.subr.mxu0 0.0
    %512 = vmatpush1.msra.mxu0 %v146
    %513 = vmatprep.subr.mxu0 0.0
    %514 = vmatpush1.msra.mxu0 %v147
    %515 = vmatprep.subr.mxu0 0.0
    %516 = vmatpush1.msra.mxu0 %v148
    %517 = vmatprep.subr.mxu0 0.0
    %518 = vmatpush1.msra.mxu0 %v149
    %519 = vmatprep.subr.mxu0 0.0
    %520 = vmatpush1.msra.mxu0 %v150
    %521 = vmatprep.subr.mxu0 0.0
    %522 = vmatpush1.msra.mxu0 %v151
    %523 = vmatprep.mubr.f32.mxu0 %v45
    %524 = vmatmul.mubr.f32.gmra.mrb[0].mxu0 %v44
    %v525 = vpop.f32.mrb[0].mxu0
    %v526 = vadd.f32 %v456, %v525
    %v527 = vpop.f32.mrb[0].mxu0
    %528 = vdwg.mxu0
    %529 = vmatprep.subr.mxu0 0.0
    %530 = vmatpush1.msra.mxu0 %v152
    %531 = vmatprep.subr.mxu0 0.0
    %532 = vmatpush1.msra.mxu0 %v153
    %533 = vmatprep.subr.mxu0 0.0
    %534 = vmatpush1.msra.mxu0 %v154
    %535 = vmatprep.subr.mxu0 0.0
    %536 = vmatpush1.msra.mxu0 %v155
    %537 = vmatprep.subr.mxu0 0.0
    %538 = vmatpush1.msra.mxu0 %v156
    %539 = vmatprep.subr.mxu0 0.0
    %540 = vmatpush1.msra.mxu0 %v157
    %541 = vmatprep.subr.mxu0 0.0
    %542 = vmatpush1.msra.mxu0 %v158
    %543 = vmatprep.subr.mxu0 0.0
    %544 = vmatpush1.msra.mxu0 %v159
    %545 = vmatprep.subr.mxu0 0.0
    %546 = vmatpush1.msra.mxu0 %v160
    %547 = vmatprep.subr.mxu0 0.0
    %548 = vmatpush1.msra.mxu0 %v161
    %549 = vmatprep.subr.mxu0 0.0
    %550 = vmatpush1.msra.mxu0 %v162
    %551 = vmatprep.subr.mxu0 0.0
    %552 = vmatpush1.msra.mxu0 %v163
    %553 = vmatprep.subr.mxu0 0.0
    %554 = vmatpush1.msra.mxu0 %v164
    %555 = vmatprep.subr.mxu0 0.0
    %556 = vmatpush1.msra.mxu0 %v165
    %557 = vmatprep.subr.mxu0 0.0
    %558 = vmatpush1.msra.mxu0 %v166
    %559 = vmatprep.subr.mxu0 0.0
    %560 = vmatpush1.msra.mxu0 %v167
    %561 = vmatprep.subr.mxu0 0.0
    %562 = vmatpush1.msra.mxu0 %v168
    %563 = vmatprep.subr.mxu0 0.0
    %564 = vmatpush1.msra.mxu0 %v169
    %565 = vmatprep.subr.mxu0 0.0
    %566 = vmatpush1.msra.mxu0 %v170
    %567 = vmatprep.subr.mxu0 0.0
    %568 = vmatpush1.msra.mxu0 %v171
    %569 = vmatprep.subr.mxu0 0.0
    %570 = vmatpush1.msra.mxu0 %v172
    %571 = vmatprep.subr.mxu0 0.0
    %572 = vmatpush1.msra.mxu0 %v173
    %573 = vmatprep.subr.mxu0 0.0
    %574 = vmatpush1.msra.mxu0 %v174
    %575 = vmatprep.subr.mxu0 0.0
    %576 = vmatpush1.msra.mxu0 %v175
    %577 = vmatprep.subr.mxu0 0.0
    %578 = vmatpush1.msra.mxu0 %v176
    %579 = vmatprep.subr.mxu0 0.0
    %580 = vmatpush1.msra.mxu0 %v177
    %581 = vmatprep.subr.mxu0 0.0
    %582 = vmatpush1.msra.mxu0 %v178
    %583 = vmatprep.subr.mxu0 0.0
    %584 = vmatpush1.msra.mxu0 %v179
    %585 = vmatprep.subr.mxu0 0.0
    %586 = vmatpush1.msra.mxu0 %v180
    %587 = vmatprep.subr.mxu0 0.0
    %588 = vmatpush1.msra.mxu0 %v181
    %589 = vmatprep.subr.mxu0 0.0
    %590 = vmatpush1.msra.mxu0 %v182
    %591 = vmatprep.subr.mxu0 0.0
    %592 = vmatpush1.msra.mxu0 %v183
    %593 = vmatprep.mubr.f32.mxu0 %v47
    %594 = vmatmul.mubr.f32.gmra.mrb[0].mxu0 %v46
    %v595 = vpop.f32.mrb[0].mxu0
    %v596 = vadd.f32 %v526, %v595
    %v597 = vpop.f32.mrb[0].mxu0
    %598 = vdwg.mxu0
    %599 = vmatprep.subr.mxu0 0.0
    %600 = vmatpush1.msra.mxu0 %v184
    %601 = vmatprep.subr.mxu0 0.0
    %602 = vmatpush1.msra.mxu0 %v185
    %603 = vmatprep.subr.mxu0 0.0
    %604 = vmatpush1.msra.mxu0 %v186
    %605 = vmatprep.subr.mxu0 0.0
    %606 = vmatpush1.msra.mxu0 %v187
    %607 = vmatprep.subr.mxu0 0.0
    %608 = vmatpush1.msra.mxu0 %v188
    %609 = vmatprep.subr.mxu0 0.0
    %610 = vmatpush1.msra.mxu0 %v189
    %611 = vmatprep.subr.mxu0 0.0
    %612 = vmatpush1.msra.mxu0 %v190
    %613 = vmatprep.subr.mxu0 0.0
    %614 = vmatpush1.msra.mxu0 %v191
    %615 = vmatprep.subr.mxu0 0.0
    %616 = vmatpush1.msra.mxu0 %v192
    %617 = vmatprep.subr.mxu0 0.0
    %618 = vmatpush1.msra.mxu0 %v193
    %619 = vmatprep.subr.mxu0 0.0
    %620 = vmatpush1.msra.mxu0 %v194
    %621 = vmatprep.subr.mxu0 0.0
    %622 = vmatpush1.msra.mxu0 %v195
    %623 = vmatprep.subr.mxu0 0.0
    %624 = vmatpush1.msra.mxu0 %v196
    %625 = vmatprep.subr.mxu0 0.0
    %626 = vmatpush1.msra.mxu0 %v197
    %627 = vmatprep.subr.mxu0 0.0
    %628 = vmatpush1.msra.mxu0 %v198
    %629 = vmatprep.subr.mxu0 0.0
    %630 = vmatpush1.msra.mxu0 %v199
    %631 = vmatprep.subr.mxu0 0.0
    %632 = vmatpush1.msra.mxu0 %v200
    %633 = vmatprep.subr.mxu0 0.0
    %634 = vmatpush1.msra.mxu0 %v201
    %635 = vmatprep.subr.mxu0 0.0
    %636 = vmatpush1.msra.mxu0 %v202
    %637 = vmatprep.subr.mxu0 0.0
    %638 = vmatpush1.msra.mxu0 %v203
    %639 = vmatprep.subr.mxu0 0.0
    %640 = vmatpush1.msra.mxu0 %v204
    %641 = vmatprep.subr.mxu0 0.0
    %642 = vmatpush1.msra.mxu0 %v205
    %643 = vmatprep.subr.mxu0 0.0
    %644 = vmatpush1.msra.mxu0 %v206
    %645 = vmatprep.subr.mxu0 0.0
    %646 = vmatpush1.msra.mxu0 %v207
    %647 = vmatprep.subr.mxu0 0.0
    %648 = vmatpush1.msra.mxu0 %v208
    %649 = vmatprep.subr.mxu0 0.0
    %650 = vmatpush1.msra.mxu0 %v209
    %651 = vmatprep.subr.mxu0 0.0
    %652 = vmatpush1.msra.mxu0 %v210
    %653 = vmatprep.subr.mxu0 0.0
    %654 = vmatpush1.msra.mxu0 %v211
    %655 = vmatprep.subr.mxu0 0.0
    %656 = vmatpush1.msra.mxu0 %v212
    %657 = vmatprep.subr.mxu0 0.0
    %658 = vmatpush1.msra.mxu0 %v213
    %659 = vmatprep.subr.mxu0 0.0
    %660 = vmatpush1.msra.mxu0 %v214
    %661 = vmatprep.subr.mxu0 0.0
    %662 = vmatpush1.msra.mxu0 %v215
    %663 = vmatprep.mubr.f32.mxu0 %v49
    %664 = vmatmul.mubr.f32.gmra.mrb[0].mxu0 %v48
    %v665 = vpop.f32.mrb[0].mxu0
    %v666 = vadd.f32 %v596, %v665
    %v667 = vpop.f32.mrb[0].mxu0
    %668 = vdwg.mxu0
    %669 = vmatprep.subr.mxu0 0.0
    %670 = vmatpush1.msra.mxu0 %v216
    %671 = vmatprep.subr.mxu0 0.0
    %672 = vmatpush1.msra.mxu0 %v217
    %673 = vmatprep.subr.mxu0 0.0
    %674 = vmatpush1.msra.mxu0 %v218
    %675 = vmatprep.subr.mxu0 0.0
    %676 = vmatpush1.msra.mxu0 %v219
    %677 = vmatprep.subr.mxu0 0.0
    %678 = vmatpush1.msra.mxu0 %v220
    %679 = vmatprep.subr.mxu0 0.0
    %680 = vmatpush1.msra.mxu0 %v221
    %681 = vmatprep.subr.mxu0 0.0
    %682 = vmatpush1.msra.mxu0 %v222
    %683 = vmatprep.subr.mxu0 0.0
    %684 = vmatpush1.msra.mxu0 %v223
    %685 = vmatprep.subr.mxu0 0.0
    %686 = vmatpush1.msra.mxu0 %v224
    %687 = vmatprep.subr.mxu0 0.0
    %688 = vmatpush1.msra.mxu0 %v225
    %689 = vmatprep.subr.mxu0 0.0
    %690 = vmatpush1.msra.mxu0 %v226
    %691 = vmatprep.subr.mxu0 0.0
    %692 = vmatpush1.msra.mxu0 %v227
    %693 = vmatprep.subr.mxu0 0.0
    %694 = vmatpush1.msra.mxu0 %v228
    %695 = vmatprep.subr.mxu0 0.0
    %696 = vmatpush1.msra.mxu0 %v229
    %697 = vmatprep.subr.mxu0 0.0
    %698 = vmatpush1.msra.mxu0 %v230
    %699 = vmatprep.subr.mxu0 0.0
    %700 = vmatpush1.msra.mxu0 %v231
    %701 = vmatprep.subr.mxu0 0.0
    %702 = vmatpush1.msra.mxu0 %v232
    %703 = vmatprep.subr.mxu0 0.0
    %704 = vmatpush1.msra.mxu0 %v233
    %705 = vmatprep.subr.mxu0 0.0
    %706 = vmatpush1.msra.mxu0 %v234
    %707 = vmatprep.subr.mxu0 0.0
    %708 = vmatpush1.msra.mxu0 %v235
    %709 = vmatprep.subr.mxu0 0.0
    %710 = vmatpush1.msra.mxu0 %v236
    %711 = vmatprep.subr.mxu0 0.0
    %712 = vmatpush1.msra.mxu0 %v237
    %713 = vmatprep.subr.mxu0 0.0
    %714 = vmatpush1.msra.mxu0 %v238
    %715 = vmatprep.subr.mxu0 0.0
    %716 = vmatpush1.msra.mxu0 %v239
    %717 = vmatprep.subr.mxu0 0.0
    %718 = vmatpush1.msra.mxu0 %v240
    %719 = vmatprep.subr.mxu0 0.0
    %720 = vmatpush1.msra.mxu0 %v241
    %721 = vmatprep.subr.mxu0 0.0
    %722 = vmatpush1.msra.mxu0 %v242
    %723 = vmatprep.subr.mxu0 0.0
    %724 = vmatpush1.msra.mxu0 %v243
    %725 = vmatprep.subr.mxu0 0.0
    %726 = vmatpush1.msra.mxu0 %v244
    %727 = vmatprep.subr.mxu0 0.0
    %728 = vmatpush1.msra.mxu0 %v245
    %729 = vmatprep.subr.mxu0 0.0
    %730 = vmatpush1.msra.mxu0 %v246
    %731 = vmatprep.subr.mxu0 0.0
    %732 = vmatpush1.msra.mxu0 %v247
    %733 = vmatprep.mubr.f32.mxu0 %v51
    %734 = vmatmul.mubr.f32.gmra.mrb[0].mxu0 %v50
    %v735 = vpop.f32.mrb[0].mxu0
    %v736 = vadd.f32 %v666, %v735
    %v737 = vpop.f32.mrb[0].mxu0
    %738 = vdwg.mxu0
    %739 = vmatprep.subr.mxu0 0.0
    %740 = vmatpush1.msra.mxu0 %v248
    %741 = vmatprep.subr.mxu0 0.0
    %742 = vmatpush1.msra.mxu0 %v249
    %743 = vmatprep.subr.mxu0 0.0
    %744 = vmatpush1.msra.mxu0 %v250
    %745 = vmatprep.subr.mxu0 0.0
    %746 = vmatpush1.msra.mxu0 %v251
    %747 = vmatprep.subr.mxu0 0.0
    %748 = vmatpush1.msra.mxu0 %v252
    %749 = vmatprep.subr.mxu0 0.0
    %750 = vmatpush1.msra.mxu0 %v253
    %751 = vmatprep.subr.mxu0 0.0
    %752 = vmatpush1.msra.mxu0 %v254
    %753 = vmatprep.subr.mxu0 0.0
    %754 = vmatpush1.msra.mxu0 %v255
    %755 = vmatprep.subr.mxu0 0.0
    %756 = vmatpush1.msra.mxu0 %v256
    %757 = vmatprep.subr.mxu0 0.0
    %758 = vmatpush1.msra.mxu0 %v257
    %759 = vmatprep.subr.mxu0 0.0
    %760 = vmatpush1.msra.mxu0 %v258
    %761 = vmatprep.subr.mxu0 0.0
    %762 = vmatpush1.msra.mxu0 %v259
    %763 = vmatprep.subr.mxu0 0.0
    %764 = vmatpush1.msra.mxu0 %v260
    %765 = vmatprep.subr.mxu0 0.0
    %766 = vmatpush1.msra.mxu0 %v261
    %767 = vmatprep.subr.mxu0 0.0
    %768 = vmatpush1.msra.mxu0 %v262
    %769 = vmatprep.subr.mxu0 0.0
    %770 = vmatpush1.msra.mxu0 %v263
    %771 = vmatprep.subr.mxu0 0.0
    %772 = vmatpush1.msra.mxu0 %v264
    %773 = vmatprep.subr.mxu0 0.0
    %774 = vmatpush1.msra.mxu0 %v265
    %775 = vmatprep.subr.mxu0 0.0
    %776 = vmatpush1.msra.mxu0 %v266
    %777 = vmatprep.subr.mxu0 0.0
    %778 = vmatpush1.msra.mxu0 %v267
    %779 = vmatprep.subr.mxu0 0.0
    %780 = vmatpush1.msra.mxu0 %v268
    %781 = vmatprep.subr.mxu0 0.0
    %782 = vmatpush1.msra.mxu0 %v269
    %783 = vmatprep.subr.mxu0 0.0
    %784 = vmatpush1.msra.mxu0 %v270
    %785 = vmatprep.subr.mxu0 0.0
    %786 = vmatpush1.msra.mxu0 %v271
    %787 = vmatprep.subr.mxu0 0.0
    %788 = vmatpush1.msra.mxu0 %v272
    %789 = vmatprep.subr.mxu0 0.0
    %790 = vmatpush1.msra.mxu0 %v273
    %791 = vmatprep.subr.mxu0 0.0
    %792 = vmatpush1.msra.mxu0 %v274
    %793 = vmatprep.subr.mxu0 0.0
    %794 = vmatpush1.msra.mxu0 %v275
    %795 = vmatprep.subr.mxu0 0.0
    %796 = vmatpush1.msra.mxu0 %v276
    %797 = vmatprep.subr.mxu0 0.0
    %798 = vmatpush1.msra.mxu0 %v277
    %799 = vmatprep.subr.mxu0 0.0
    %800 = vmatpush1.msra.mxu0 %v278
    %801 = vmatprep.subr.mxu0 0.0
    %802 = vmatpush1.msra.mxu0 %v279
    %803 = vmatprep.mubr.f32.mxu0 %v53
    %804 = vmatmul.mubr.f32.gmra.mrb[0].mxu0 %v52
    %v805 = vpop.f32.mrb[0].mxu0
    %v806 = vadd.f32 %v736, %v805
    %v807 = vpop.f32.mrb[0].mxu0
    %808 = vdwg.mxu0
    %809 = vmatprep.subr.mxu0 0.0
    %810 = vmatpush1.msra.mxu0 %v280
    %811 = vmatprep.subr.mxu0 0.0
    %812 = vmatpush1.msra.mxu0 %v281
    %813 = vmatprep.subr.mxu0 0.0
    %814 = vmatpush1.msra.mxu0 %v282
    %815 = vmatprep.subr.mxu0 0.0
    %816 = vmatpush1.msra.mxu0 %v283
    %817 = vmatprep.subr.mxu0 0.0
    %818 = vmatpush1.msra.mxu0 %v284
    %819 = vmatprep.subr.mxu0 0.0
    %820 = vmatpush1.msra.mxu0 %v285
    %821 = vmatprep.subr.mxu0 0.0
    %822 = vmatpush1.msra.mxu0 %v286
    %823 = vmatprep.subr.mxu0 0.0
    %824 = vmatpush1.msra.mxu0 %v287
    %825 = vmatprep.subr.mxu0 0.0
    %826 = vmatpush1.msra.mxu0 %v288
    %827 = vmatprep.subr.mxu0 0.0
    %828 = vmatpush1.msra.mxu0 %v289
    %829 = vmatprep.subr.mxu0 0.0
    %830 = vmatpush1.msra.mxu0 %v290
    %831 = vmatprep.subr.mxu0 0.0
    %832 = vmatpush1.msra.mxu0 %v291
    %833 = vmatprep.subr.mxu0 0.0
    %834 = vmatpush1.msra.mxu0 %v292
    %835 = vmatprep.subr.mxu0 0.0
    %836 = vmatpush1.msra.mxu0 %v293
    %837 = vmatprep.subr.mxu0 0.0
    %838 = vmatpush1.msra.mxu0 %v294
    %839 = vmatprep.subr.mxu0 0.0
    %840 = vmatpush1.msra.mxu0 %v295
    %841 = vmatprep.subr.mxu0 0.0
    %842 = vmatpush1.msra.mxu0 %v296
    %843 = vmatprep.subr.mxu0 0.0
    %844 = vmatpush1.msra.mxu0 %v297
    %845 = vmatprep.subr.mxu0 0.0
    %846 = vmatpush1.msra.mxu0 %v298
    %847 = vmatprep.subr.mxu0 0.0
    %848 = vmatpush1.msra.mxu0 %v299
    %849 = vmatprep.subr.mxu0 0.0
    %850 = vmatpush1.msra.mxu0 %v300
    %851 = vmatprep.subr.mxu0 0.0
    %852 = vmatpush1.msra.mxu0 %v301
    %853 = vmatprep.subr.mxu0 0.0
    %854 = vmatpush1.msra.mxu0 %v302
    %855 = vmatprep.subr.mxu0 0.0
    %856 = vmatpush1.msra.mxu0 %v303
    %857 = vmatprep.subr.mxu0 0.0
    %858 = vmatpush1.msra.mxu0 %v304
    %859 = vmatprep.subr.mxu0 0.0
    %860 = vmatpush1.msra.mxu0 %v305
    %861 = vmatprep.subr.mxu0 0.0
    %862 = vmatpush1.msra.mxu0 %v306
    %863 = vmatprep.subr.mxu0 0.0
    %864 = vmatpush1.msra.mxu0 %v307
    %865 = vmatprep.subr.mxu0 0.0
    %866 = vmatpush1.msra.mxu0 %v308
    %867 = vmatprep.subr.mxu0 0.0
    %868 = vmatpush1.msra.mxu0 %v309
    %869 = vmatprep.subr.mxu0 0.0
    %870 = vmatpush1.msra.mxu0 %v310
    %871 = vmatprep.subr.mxu0 0.0
    %872 = vmatpush1.msra.mxu0 %v311
    %873 = vmatprep.mubr.f32.mxu0 %v55
    %874 = vmatmul.mubr.f32.gmra.mrb[0].mxu0 %v54
    %v875 = vpop.f32.mrb[0].mxu0
    %v876 = vadd.f32 %v806, %v875
    %v877 = vpop.f32.mrb[0].mxu0
    %878 = vdwg.mxu0
    %v879 = vmax.f32 %v876, 0.0
    %v880 = vld [vmem:[%s3] sm:$0xff]
    %v881 = vld [vmem:[%s3 + $0x8] sm:$0xff]
    %v882 = vld [vmem:[%s3 + $0x10] sm:$0xff]
    %v883 = vld [vmem:[%s3 + $0x18] sm:$0xff]
    %v884 = vld [vmem:[%s3 + $0x20] sm:$0xff]
    %v885 = vld [vmem:[%s3 + $0x28] sm:$0xff]
    %v886 = vld [vmem:[%s3 + $0x30] sm:$0xff]
    %v887 = vld [vmem:[%s3 + $0x38] sm:$0xff]
    %v888 = vld [vmem:[%s3 + $0x40] sm:$0xff]
    %v889 = vld [vmem:[%s3 + $0x48] sm:$0xff]
    %v890 = vld [vmem:[%s3 + $0x50] sm:$0xff]
    %v891 = vld [vmem:[%s3 + $0x58] sm:$0xff]
    %v892 = vld [vmem:[%s3 + $0x60] sm:$0xff]
    %v893 = vld [vmem:[%s3 + $0x68] sm:$0xff]
    %v894 = vld [vmem:[%s3 + $0x70] sm:$0xff]
    %v895 = vld [vmem:[%s3 + $0x78] sm:$0xff]
    %v896 = vld [vmem:[%s4] sm:$0x1]
    %v898 = vlaneseq
    %v899 = vshrl.u32 %v898, 7
    %v900 = vsub.s32 0, %v899
    %v901 = vrot.slane %v896, %v900
    %903 = vmatprep.subr.mxu0 0.0
    %904 = vmatpush1.msra.mxu0 %v880
    %905 = vmatprep.subr.mxu0 0.0
    %906 = vmatpush1.msra.mxu0 %v881
    %907 = vmatprep.subr.mxu0 0.0
    %908 = vmatpush1.msra.mxu0 %v882
    %909 = vmatprep.subr.mxu0 0.0
    %910 = vmatpush1.msra.mxu0 %v883
    %911 = vmatprep.subr.mxu0 0.0
    %912 = vmatpush1.msra.mxu0 %v884
    %913 = vmatprep.subr.mxu0 0.0
    %914 = vmatpush1.msra.mxu0 %v885
    %915 = vmatprep.subr.mxu0 0.0
    %916 = vmatpush1.msra.mxu0 %v886
    %917 = vmatprep.subr.mxu0 0.0
    %918 = vmatpush1.msra.mxu0 %v887
    %919 = vmatprep.subr.mxu0 0.0
    %920 = vmatpush1.msra.mxu0 %v888
    %921 = vmatprep.subr.mxu0 0.0
    %922 = vmatpush1.msra.mxu0 %v889
    %923 = vmatprep.subr.mxu0 0.0
    %924 = vmatpush1.msra.mxu0 %v890
    %925 = vmatprep.subr.mxu0 0.0
    %926 = vmatpush1.msra.mxu0 %v891
    %927 = vmatprep.subr.mxu0 0.0
    %928 = vmatpush1.msra.mxu0 %v892
    %929 = vmatprep.subr.mxu0 0.0
    %930 = vmatpush1.msra.mxu0 %v893
    %931 = vmatprep.subr.mxu0 0.0
    %932 = vmatpush1.msra.mxu0 %v894
    %933 = vmatprep.subr.mxu0 0.0
    %934 = vmatpush1.msra.mxu0 %v895
    %935 = vmatprep.subr.mxu0 0.0
    %936 = vmatpush1.msra.mxu0 0.0
    %937 = vmatprep.subr.mxu0 0.0
    %938 = vmatpush1.msra.mxu0 0.0
    %939 = vmatprep.subr.mxu0 0.0
    %940 = vmatpush1.msra.mxu0 0.0
    %941 = vmatprep.subr.mxu0 0.0
    %942 = vmatpush1.msra.mxu0 0.0
    %943 = vmatprep.subr.mxu0 0.0
    %944 = vmatpush1.msra.mxu0 0.0
    %945 = vmatprep.subr.mxu0 0.0
    %946 = vmatpush1.msra.mxu0 0.0
    %947 = vmatprep.subr.mxu0 0.0
    %948 = vmatpush1.msra.mxu0 0.0
    %949 = vmatprep.subr.mxu0 0.0
    %950 = vmatpush1.msra.mxu0 0.0
    %951 = vmatprep.subr.mxu0 0.0
    %952 = vmatpush1.msra.mxu0 0.0
    %953 = vmatprep.subr.mxu0 0.0
    %954 = vmatpush1.msra.mxu0 0.0
    %955 = vmatprep.subr.mxu0 0.0
    %956 = vmatpush1.msra.mxu0 0.0
    %957 = vmatprep.subr.mxu0 0.0
    %958 = vmatpush1.msra.mxu0 0.0
    %959 = vmatprep.subr.mxu0 0.0
    %960 = vmatpush1.msra.mxu0 0.0
    %961 = vmatprep.subr.mxu0 0.0
    %962 = vmatpush1.msra.mxu0 0.0
    %963 = vmatprep.subr.mxu0 0.0
    %964 = vmatpush1.msra.mxu0 0.0
    %965 = vmatprep.subr.mxu0 0.0
    %966 = vmatpush1.msra.mxu0 0.0
    %967 = vmatprep.mubr.f32.mxu0 0.0
    %968 = vmatmul.mubr.f32.gmra.mrb[0].mxu0 %v879
    %v969 = vpop.f32.mrb[0].mxu0
    %v970 = vadd.f32 %v901, %v969
    %v971 = vpop.f32.mrb[0].mxu0
    %972 = vdwg.mxu0
    %v973 = vmax.f32 %v970, 0.0
    %v974 = vld [vmem:[%s5] sm:$0xff]
    %v975 = vld [vmem:[%s5 + $0x8] sm:$0xff]
    %v976 = vld [vmem:[%s5 + $0x10] sm:$0xff]
    %v977 = vld [vmem:[%s5 + $0x18] sm:$0xff]
    %v978 = vld [vmem:[%s5 + $0x20] sm:$0xff]
    %v979 = vld [vmem:[%s5 + $0x28] sm:$0xff]
    %v980 = vld [vmem:[%s5 + $0x30] sm:$0xff]
    %v981 = vld [vmem:[%s5 + $0x38] sm:$0xff]
    %v982 = vld [vmem:[%s5 + $0x40] sm:$0xff]
    %v983 = vld [vmem:[%s5 + $0x48] sm:$0xff]
    %v984 = vld [vmem:[%s5 + $0x50] sm:$0xff]
    %v985 = vld [vmem:[%s5 + $0x58] sm:$0xff]
    %v986 = vld [vmem:[%s5 + $0x60] sm:$0xff]
    %v987 = vld [vmem:[%s5 + $0x68] sm:$0xff]
    %v988 = vld [vmem:[%s5 + $0x70] sm:$0xff]
    %v989 = vld [vmem:[%s5 + $0x78] sm:$0xff]
    %v990 = vld [vmem:[%s6] sm:$0x1]
    %v992 = vlaneseq
    %v993 = vshrl.u32 %v992, 7
    %v994 = vsub.s32 0, %v993
    %v995 = vrot.slane %v990, %v994
    %997 = vmatprep.subr.mxu0 0.0
    %998 = vmatpush1.msra.mxu0 %v974
    %999 = vmatprep.subr.mxu0 0.0
    %1000 = vmatpush1.msra.mxu0 %v975
    %1001 = vmatprep.subr.mxu0 0.0
    %1002 = vmatpush1.msra.mxu0 %v976
    %1003 = vmatprep.subr.mxu0 0.0
    %1004 = vmatpush1.msra.mxu0 %v977
    %1005 = vmatprep.subr.mxu0 0.0
    %1006 = vmatpush1.msra.mxu0 %v978
    %1007 = vmatprep.subr.mxu0 0.0
    %1008 = vmatpush1.msra.mxu0 %v979
    %1009 = vmatprep.subr.mxu0 0.0
    %1010 = vmatpush1.msra.mxu0 %v980
    %1011 = vmatprep.subr.mxu0 0.0
    %1012 = vmatpush1.msra.mxu0 %v981
    %1013 = vmatprep.subr.mxu0 0.0
    %1014 = vmatpush1.msra.mxu0 %v982
    %1015 = vmatprep.subr.mxu0 0.0
    %1016 = vmatpush1.msra.mxu0 %v983
    %1017 = vmatprep.subr.mxu0 0.0
    %1018 = vmatpush1.msra.mxu0 %v984
    %1019 = vmatprep.subr.mxu0 0.0
    %1020 = vmatpush1.msra.mxu0 %v985
    %1021 = vmatprep.subr.mxu0 0.0
    %1022 = vmatpush1.msra.mxu0 %v986
    %1023 = vmatprep.subr.mxu0 0.0
    %1024 = vmatpush1.msra.mxu0 %v987
    %1025 = vmatprep.subr.mxu0 0.0
    %1026 = vmatpush1.msra.mxu0 %v988
    %1027 = vmatprep.subr.mxu0 0.0
    %1028 = vmatpush1.msra.mxu0 %v989
    %1029 = vmatprep.subr.mxu0 0.0
    %1030 = vmatpush1.msra.mxu0 0.0
    %1031 = vmatprep.subr.mxu0 0.0
    %1032 = vmatpush1.msra.mxu0 0.0
    %1033 = vmatprep.subr.mxu0 0.0
    %1034 = vmatpush1.msra.mxu0 0.0
    %1035 = vmatprep.subr.mxu0 0.0
    %1036 = vmatpush1.msra.mxu0 0.0
    %1037 = vmatprep.subr.mxu0 0.0
    %1038 = vmatpush1.msra.mxu0 0.0
    %1039 = vmatprep.subr.mxu0 0.0
    %1040 = vmatpush1.msra.mxu0 0.0
    %1041 = vmatprep.subr.mxu0 0.0
    %1042 = vmatpush1.msra.mxu0 0.0
    %1043 = vmatprep.subr.mxu0 0.0
    %1044 = vmatpush1.msra.mxu0 0.0
    %1045 = vmatprep.subr.mxu0 0.0
    %1046 = vmatpush1.msra.mxu0 0.0
    %1047 = vmatprep.subr.mxu0 0.0
    %1048 = vmatpush1.msra.mxu0 0.0
    %1049 = vmatprep.subr.mxu0 0.0
    %1050 = vmatpush1.msra.mxu0 0.0
    %1051 = vmatprep.subr.mxu0 0.0
    %1052 = vmatpush1.msra.mxu0 0.0
    %1053 = vmatprep.subr.mxu0 0.0
    %1054 = vmatpush1.msra.mxu0 0.0
    %1055 = vmatprep.subr.mxu0 0.0
    %1056 = vmatpush1.msra.mxu0 0.0
    %1057 = vmatprep.subr.mxu0 0.0
    %1058 = vmatpush1.msra.mxu0 0.0
    %1059 = vmatprep.subr.mxu0 0.0
    %1060 = vmatpush1.msra.mxu0 0.0
    %1061 = vmatprep.mubr.f32.mxu0 0.0
    %1062 = vmatmul.mubr.f32.gmra.mrb[0].mxu0 %v973
    %v1063 = vpop.f32.mrb[0].mxu0
    %v1064 = vadd.f32 %v995, %v1063
    %v1065 = vpop.f32.mrb[0].mxu0
    %1066 = vdwg.mxu0
    %1067 = vst [vmem:[%s7] sm:$0xff] %v1064
    // Predicated region
    $region34: #{mymodel_forward.1} parent=1 // pred_check
      _
    $region35: #{mymodel_forward.1} parent=1 // pred_check_branch
      %1069 = sbr.rel (0) target = $region37
    $region36: #{mymodel_forward.1} parent=1 // pred_region
      _
    $region37: #{mymodel_forward.1} parent=1 // pred_fallthru
      _
    // Predicated region
    $region38: #{mymodel_forward.1} parent=1 // pred_check
      _
    $region39: #{mymodel_forward.1} parent=1 // pred_check_branch
      %1071 = sbr.rel (0) target = $region41
    $region40: #{mymodel_forward.1} parent=1 // pred_region
      _
    $region41: #{mymodel_forward.1} parent=1 // pred_fallthru
      _
    %1072 = vsyncpa [#allocation3], 1

</llo_original>
